<compile_context>
chip_gen: v6e
topology: v6e:2x2x1
jax: 0.10.0
libtpu: 0.0.40
codegen_flags: <defaults>
</compile_context>

<pallas_src>
import functools

import jax
import jax.numpy as jnp
from jax import lax
from jax.experimental import pallas as pl
from jax.experimental.pallas import tpu as pltpu

LN_EPS = 1e-5
_LANE = 128
_SUBLANE = 8


def _round_up(x, m):
    return (x + m - 1) // m * m


def _proj_ln_kernel(x_ref, w_ref, p_ref, o_ref, acc_ref, *,
                    h_out, eps, matmul_dtype):
    """K-tiled fused Linear + LayerNorm.

    Grid = (m_tiles, k_tiles); k is the innermost ('arbitrary') reduction axis.

    x_ref:   (tile_m, tile_k)        activation K-slab
    w_ref:   (tile_k, H_out_p)       weight K-slab (pre-transposed, zero-padded,
                                     pre-cast to the matmul dtype at init)
    p_ref:   (8, H_out_p)            stacked f32 [bias, gamma, beta, 0...] rows
    o_ref:   (tile_m, H_out_p)       lane-dense output block (resident over k)
    acc_ref: (tile_m, H_out_p) f32   VMEM accumulator scratch
    """
    k = pl.program_id(1)

    @pl.when(k == 0)
    def _():
        acc_ref[...] = jnp.zeros_like(acc_ref)

    x = x_ref[...]
    if matmul_dtype is not None:
        x = x.astype(matmul_dtype)          # weight already pre-cast at init
    acc_ref[...] += jnp.dot(x, w_ref[...],
                            preferred_element_type=jnp.float32)

    @pl.when(k == pl.num_programs(1) - 1)
    def _():
        b32 = p_ref[0:1, :].astype(jnp.float32)
        g32 = p_ref[1:2, :].astype(jnp.float32)
        beta32 = p_ref[2:3, :].astype(jnp.float32)

        # Linear epilogue: y = acc + b (f32).
        y = acc_ref[...] + b32

        # LayerNorm over the true H_out features. Padded columns of y are
        # exactly zero (weight pad columns + bias pad are zero), so no
        # pre-mean mask is needed; only `centered` must be masked.
        h_pad = y.shape[-1]
        inv_h = 1.0 / h_out
        mean = jnp.sum(y, axis=-1, keepdims=True) * inv_h
        centered = y - mean
        if h_pad != h_out:
            valid = lax.broadcasted_iota(jnp.int32, y.shape, 1) < h_out
            centered = jnp.where(valid, centered, 0.0)
        var = jnp.sum(centered * centered, axis=-1, keepdims=True) * inv_h
        out = centered * lax.rsqrt(var + eps) * g32 + beta32
        o_ref[...] = out.astype(o_ref.dtype)


def cformer_project(x, w_pad, params_pad, h_out, *, eps=LN_EPS,
                    matmul_dtype=None, tile_m_max=512, tile_k_max=512):
    """Fused projector (Linear) + LayerNorm.

    x:          (..., H_in)        all leading dims flattened into one M axis
    w_pad:      (H_in_pad, H_out_p) pre-transposed, zero-padded (and possibly
                                    pre-cast) projector weight for x @ W
    params_pad: (8, H_out_p)        f32 rows [bias, gamma, beta, 0...]
    h_out:      true output feature count (<= H_out_p)
    returns     (..., h_out) with x.dtype
    """
    lead = x.shape[:-1]
    H_in = x.shape[-1]
    H_in_pad, H_out_p = w_pad.shape

    x2 = x.reshape(-1, H_in)
    M = x2.shape[0]
    M8 = _round_up(max(M, 1), _SUBLANE)

    # K tiling: largest lane-multiple <= tile_k_max that divides H_in_pad
    # (128 always divides H_in_pad, so this always succeeds).
    tile_k = _LANE
    for cand in range(_round_up(tile_k_max, _LANE), 0, -_LANE):
        if H_in_pad % cand == 0:
            tile_k = cand
            break
    n_k = H_in_pad // tile_k

    # Balanced M tiling: avoids up to tile_m-8 wasted rows of compute.
    n_m = -(-M8 // tile_m_max)
    tile_m = _round_up(-(-M8 // n_m), _SUBLANE)
    M_p = n_m * tile_m

    dt = x.dtype
    x_p = jnp.pad(x2, ((0, M_p - M), (0, H_in_pad - H_in)))

    in_item = jnp.dtype(dt).itemsize
    w_item = jnp.dtype(w_pad.dtype).itemsize

    # Explicit scoped-VMEM budget: double-buffered x/w/out blocks + f32
    # accumulator + params, with 2x headroom, capped at v7x's 64 MiB physical.
    resident = (2 * tile_m * tile_k * in_item
                + 2 * tile_k * H_out_p * w_item
                + 2 * tile_m * H_out_p * in_item
                + tile_m * H_out_p * 4
                + 2 * _SUBLANE * H_out_p * 4)
    vmem_limit = int(min(64 * 1024 * 1024, max(2 * resident, 16 * 1024 * 1024)))

    cost = pl.CostEstimate(
        flops=2 * M_p * H_in_pad * H_out_p + 8 * M_p * H_out_p,
        transcendentals=M_p,  # one rsqrt per row
        bytes_accessed=(M_p * H_in_pad * in_item
                        + n_m * H_in_pad * H_out_p * w_item
                        + _SUBLANE * H_out_p * 4
                        + M_p * H_out_p * in_item),
    )

    # For tiny-M (weight-DMA-bound) calls, keep the M axis on one core so the
    # shared weight is not DMA'd once per TensorCore; parallelize when M is big.
    m_sem = "parallel" if n_m >= 4 else "arbitrary"

    kernel = functools.partial(_proj_ln_kernel, h_out=h_out, eps=eps,
                               matmul_dtype=matmul_dtype)

    out_p = pl.pallas_call(
        kernel,
        out_shape=jax.ShapeDtypeStruct((M_p, H_out_p), dt),
        grid_spec=pltpu.PrefetchScalarGridSpec(
            num_scalar_prefetch=0,
            grid=(n_m, n_k),
            in_specs=[
                pl.BlockSpec((tile_m, tile_k), lambda i, k: (i, k)),
                pl.BlockSpec((tile_k, H_out_p), lambda i, k: (k, 0)),
                pl.BlockSpec((_SUBLANE, H_out_p), lambda i, k: (0, 0)),
            ],
            out_specs=pl.BlockSpec((tile_m, H_out_p), lambda i, k: (i, 0)),
            scratch_shapes=[pltpu.VMEM((tile_m, H_out_p), jnp.float32)],
        ),
        compiler_params=pltpu.CompilerParams(
            dimension_semantics=(m_sem, "arbitrary"),
            vmem_limit_bytes=vmem_limit),
        cost_estimate=cost,
    )(x_p, w_pad, params_pad)

    out = out_p[:M, :h_out]
    return out.reshape(lead + (h_out,))


class CFormerPallas:
    """Minimal JAX/Pallas counterpart of the CFormer projector path."""

    def __init__(self, num_query_tokens, roberta_hidden, lm_hidden, key,
                 initializer_range=0.02, matmul_dtype=None):
        self.num_query_tokens = num_query_tokens
        self.lm_hidden = lm_hidden
        self.matmul_dtype = matmul_dtype

        k1, k2, k3 = jax.random.split(key, 3)
        # nn.Parameter(zeros).normal_(std=initializer_range)
        self.query_token_embeds = initializer_range * jax.random.normal(
            k1, (num_query_tokens, roberta_hidden), dtype=jnp.float32)
        # nn.Linear(roberta_hidden, lm_hidden): weight (out, in), bias (out,)
        bound = 1.0 / jnp.sqrt(roberta_hidden)
        w = jax.random.uniform(k2, (lm_hidden, roberta_hidden),
                               minval=-bound, maxval=bound, dtype=jnp.float32)
        self.proj_w_t = jnp.transpose(w)            # (H_in, H_out) for x @ W
        self.proj_b = jax.random.uniform(k3, (lm_hidden,),
                                         minval=-bound, maxval=bound,
                                         dtype=jnp.float32)
        # nn.LayerNorm default init
        self.ln_gamma = jnp.ones((lm_hidden,), dtype=jnp.float32)
        self.ln_beta = jnp.zeros((lm_hidden,), dtype=jnp.float32)

        # --- hoisted, done-once kernel-layout prep (perf feedback) ---------
        H_in_pad = _round_up(roberta_hidden, _LANE)
        H_out_p = _round_up(lm_hidden, _LANE)
        w_pad = jnp.pad(self.proj_w_t,
                        ((0, H_in_pad - roberta_hidden),
                         (0, H_out_p - lm_hidden)))
        if matmul_dtype is not None:
            w_pad = w_pad.astype(matmul_dtype)   # cast once, not per call
        self.w_pad = w_pad
        params = jnp.zeros((_SUBLANE, H_out_p), dtype=jnp.float32)
        params = params.at[0, :lm_hidden].set(self.proj_b)
        params = params.at[1, :lm_hidden].set(self.ln_gamma)
        params = params.at[2, :lm_hidden].set(self.ln_beta)
        self.params_pad = params

    def gen_query_embeds_pt(self, batch_size):
        # query_token_embeds.unsqueeze(0).expand(batch_size, -1, -1)
        return jnp.broadcast_to(
            self.query_token_embeds[None, :, :],
            (batch_size, self.num_query_tokens,
             self.query_token_embeds.shape[-1]),
        )

    def _project(self, x):
        return cformer_project(x, self.w_pad, self.params_pad, self.lm_hidden,
                               matmul_dtype=self.matmul_dtype)

    def construct_inputs_embeds(self, batch_size):
        # Valid ONLY while the Roberta encoder is stubbed: per-batch query
        # embeds are identical by construction, so project ONCE on (Q, H_in)
        # and broadcast the (Q, H_out) result (removes Bx HBM traffic/compute).
        res = self._project(self.query_token_embeds)
        return jnp.broadcast_to(res[None, :, :], (batch_size,) + res.shape)

    def construct_inputs_embeds_per_batch(self, query_embeds):
        # General path for a real encoder (per-batch embeds differ):
        # (B, Q, H_in) rows are flattened to one lane-dense M axis in-kernel.
        return self._project(query_embeds)


def _reference(query_embeds, proj_w_t, proj_b, gamma, beta):
    y = jnp.einsum("bqh,ho->bqo", query_embeds, proj_w_t) + proj_b
    mean = jnp.mean(y, axis=-1, keepdims=True)
    var = jnp.mean((y - mean) ** 2, axis=-1, keepdims=True)
    return (y - mean) * lax.rsqrt(var + LN_EPS) * gamma + beta


if __name__ == "__main__":
    key = jax.random.PRNGKey(0)

    batch = 2
    num_query_tokens = 8       # config.num_query_tokens
    roberta_hidden = 32        # roberta_config.hidden_size
    lm_hidden = 64             # config.hidden_size (LM / decoder width)

    # ---- exact f32 path --------------------------------------------------
    model = CFormerPallas(num_query_tokens, roberta_hidden, lm_hidden, key)

    ref = _reference(model.gen_query_embeds_pt(batch), model.proj_w_t,
                     model.proj_b, model.ln_gamma, model.ln_beta)

    out = model.construct_inputs_embeds(batch)
    out = jax.block_until_ready(out)
    assert out.shape == (batch, num_query_tokens, lm_hidden)
    assert jnp.allclose(out, ref, atol=1e-5, rtol=1e-5)

    out_general = model.construct_inputs_embeds_per_batch(
        model.gen_query_embeds_pt(batch))
    out_general = jax.block_until_ready(out_general)
    assert out_general.shape == (batch, num_query_tokens, lm_hidden)
    assert jnp.allclose(out_general, ref, atol=1e-5, rtol=1e-5)

    # ---- bf16 MXU-input path (production default on v6e/v7x/v5e) ----------
    # Accumulation and LayerNorm stay f32, so only matmul-input rounding
    # differs; looser tolerance per the review's correctness note.
    model_bf16 = CFormerPallas(num_query_tokens, roberta_hidden, lm_hidden,
                               key, matmul_dtype=jnp.bfloat16)
    out_bf16 = model_bf16.construct_inputs_embeds_per_batch(
        model_bf16.gen_query_embeds_pt(batch))
    out_bf16 = jax.block_until_ready(out_bf16)
    assert out_bf16.shape == (batch, num_query_tokens, lm_hidden)
    assert jnp.allclose(out_bf16, ref, atol=5e-2, rtol=5e-2)

    print("KERNEL_OK")
</pallas_src>

<mosaic_0001>
module attributes {stable_mosaic.version = 11 : i64} {
  func.func @_proj_ln_kernel(%arg0: i32, %arg1: i32, %arg2: memref<8x128xf32, #tpu.memory_space<vmem>>, %arg3: memref<128x128xf32, #tpu.memory_space<vmem>>, %arg4: memref<8x128xf32, #tpu.memory_space<vmem>>, %arg5: memref<8x128xf32, #tpu.memory_space<vmem>>, %arg6: memref<8x128xf32, #tpu.memory_space<vmem>>) attributes {dimension_semantics = [#tpu.dimension_semantics<arbitrary>, #tpu.dimension_semantics<arbitrary>], iteration_bounds = array<i64: 1, 1>, scalar_prefetch = 0 : i64, scratch_operands = 1 : i64, tpu.core_type = #tpu.core_type<tc>, window_params = [{transform_indices = @transform_0, window_bounds = array<i64: 8, 128>}, {transform_indices = @transform_1, window_bounds = array<i64: 128, 128>}, {pipeline_mode = #tpu.pipeline_mode<synchronous>, transform_indices = @transform_2, window_bounds = array<i64: 8, 128>}, {transform_indices = @transform_3, window_bounds = array<i64: 8, 128>}]} {
    %c0_i32 = arith.constant 0 : i32
    %0 = arith.cmpi eq, %arg1, %c0_i32 : i32
    %1 = arith.extui %0 : i1 to i32
    %c0_i32_0 = arith.constant 0 : i32
    %2 = arith.cmpi ne, %1, %c0_i32_0 : i32
    scf.if %2 {
      %cst_10 = arith.constant 0.000000e+00 : f32
      %12 = vector.broadcast %cst_10 : f32 to vector<8x128xf32>
      %c0_11 = arith.constant 0 : index
      %c0_12 = arith.constant 0 : index
      %13 = vector.load %arg6[%c0_11, %c0_12] : memref<8x128xf32, #tpu.memory_space<vmem>>, vector<8x128xf32>
      tpu.vector_store %arg6[%c0_11, %c0_12], %12 {strides = array<i32>} : memref<8x128xf32, #tpu.memory_space<vmem>>, vector<8x128xf32>,
    } else {
    }
    %c0 = arith.constant 0 : index
    %c0_1 = arith.constant 0 : index
    %3 = vector.load %arg2[%c0, %c0_1] : memref<8x128xf32, #tpu.memory_space<vmem>>, vector<8x128xf32>
    %c0_2 = arith.constant 0 : index
    %c0_3 = arith.constant 0 : index
    %4 = vector.load %arg6[%c0_2, %c0_3] : memref<8x128xf32, #tpu.memory_space<vmem>>, vector<8x128xf32>
    %c0_4 = arith.constant 0 : index
    %c0_5 = arith.constant 0 : index
    %5 = vector.load %arg3[%c0_4, %c0_5] : memref<128x128xf32, #tpu.memory_space<vmem>>, vector<128x128xf32>
    %cst = arith.constant dense<0.000000e+00> : vector<8x128xf32>
    %6 = tpu.matmul %3, %5, %cst {dimension_numbers = #tpu.dot_dimension_numbers<[1], [0], [0], [1], [0, 0, 1, 1], [], []>} : vector<8x128xf32>, vector<128x128xf32>, vector<8x128xf32> -> vector<8x128xf32>
    %7 = arith.addf %4, %6 : vector<8x128xf32>
    %c0_6 = arith.constant 0 : index
    %c0_7 = arith.constant 0 : index
    %8 = vector.load %arg6[%c0_6, %c0_7] : memref<8x128xf32, #tpu.memory_space<vmem>>, vector<8x128xf32>
    tpu.vector_store %arg6[%c0_6, %c0_7], %7 {strides = array<i32>} : memref<8x128xf32, #tpu.memory_space<vmem>>, vector<8x128xf32>,
    %c0_i32_8 = arith.constant 0 : i32
    %9 = arith.cmpi eq, %arg1, %c0_i32_8 : i32
    %10 = arith.extui %9 : i1 to i32
    %c0_i32_9 = arith.constant 0 : i32
    %11 = arith.cmpi ne, %10, %c0_i32_9 : i32
    scf.if %11 {
      %c0_10 = arith.constant 0 : index
      %c0_11 = arith.constant 0 : index
      %12 = vector.load %arg4[%c0_10, %c0_11] : memref<8x128xf32, #tpu.memory_space<vmem>>, vector<1x128xf32>
      %c1 = arith.constant 1 : index
      %c0_12 = arith.constant 0 : index
      %13 = vector.load %arg4[%c1, %c0_12] : memref<8x128xf32, #tpu.memory_space<vmem>>, vector<1x128xf32>
      %c2 = arith.constant 2 : index
      %c0_13 = arith.constant 0 : index
      %14 = vector.load %arg4[%c2, %c0_13] : memref<8x128xf32, #tpu.memory_space<vmem>>, vector<1x128xf32>
      %c0_14 = arith.constant 0 : index
      %c0_15 = arith.constant 0 : index
      %15 = vector.load %arg6[%c0_14, %c0_15] : memref<8x128xf32, #tpu.memory_space<vmem>>, vector<8x128xf32>
      %16 = vector.broadcast %12 : vector<1x128xf32> to vector<8x128xf32>
      %17 = arith.addf %15, %16 : vector<8x128xf32>
      %cst_16 = arith.constant dense<0.000000e+00> : vector<8xf32>
      %18 = vector.multi_reduction <add>, %17, %cst_16 [1] : vector<8x128xf32> to vector<8xf32>
      %19 = vector.shape_cast %18 : vector<8xf32> to vector<8x1xf32>
      %cst_17 = arith.constant 1.562500e-02 : f32
      %20 = vector.broadcast %cst_17 : f32 to vector<8x1xf32>
      %21 = arith.mulf %19, %20 : vector<8x1xf32>
      %22 = vector.broadcast %21 : vector<8x1xf32> to vector<8x128xf32>
      %23 = arith.subf %17, %22 : vector<8x128xf32>
      %24 = tpu.iota {dimensions = array<i32: 1>} : vector<8x128xi32>
      %c64_i32 = arith.constant 64 : i32
      %25 = vector.broadcast %c64_i32 : i32 to vector<8x128xi32>
      %26 = arith.cmpi slt, %24, %25 : vector<8x128xi32>
      %cst_18 = arith.constant 0.000000e+00 : f32
      %27 = vector.broadcast %cst_18 : f32 to vector<8x128xf32>
      %28 = arith.select %26, %23, %27 : vector<8x128xi1>, vector<8x128xf32>
      %29 = arith.mulf %28, %28 : vector<8x128xf32>
      %cst_19 = arith.constant dense<0.000000e+00> : vector<8xf32>
      %30 = vector.multi_reduction <add>, %29, %cst_19 [1] : vector<8x128xf32> to vector<8xf32>
      %31 = vector.shape_cast %30 : vector<8xf32> to vector<8x1xf32>
      %cst_20 = arith.constant 1.562500e-02 : f32
      %32 = vector.broadcast %cst_20 : f32 to vector<8x1xf32>
      %33 = arith.mulf %31, %32 : vector<8x1xf32>
      %cst_21 = arith.constant 9.99999974E-6 : f32
      %34 = vector.broadcast %cst_21 : f32 to vector<8x1xf32>
      %35 = arith.addf %33, %34 : vector<8x1xf32>
      %36 = math.rsqrt %35 : vector<8x1xf32>
      %37 = vector.broadcast %36 : vector<8x1xf32> to vector<8x128xf32>
      %38 = arith.mulf %28, %37 : vector<8x128xf32>
      %39 = vector.broadcast %13 : vector<1x128xf32> to vector<8x128xf32>
      %40 = arith.mulf %38, %39 : vector<8x128xf32>
      %41 = vector.broadcast %14 : vector<1x128xf32> to vector<8x128xf32>
      %42 = arith.addf %40, %41 : vector<8x128xf32>
      %c0_22 = arith.constant 0 : index
      %c0_23 = arith.constant 0 : index
      %43 = vector.load %arg5[%c0_22, %c0_23] : memref<8x128xf32, #tpu.memory_space<vmem>>, vector<8x128xf32>
      tpu.vector_store %arg5[%c0_22, %c0_23], %42 {strides = array<i32>} : memref<8x128xf32, #tpu.memory_space<vmem>>, vector<8x128xf32>,
    } else {
    }
    return
  }
  func.func @transform_0(%arg0: i32, %arg1: i32) -> (i32, i32) {
    %c0_i32 = arith.constant 0 : i32
    return %arg0, %arg1 : i32, i32
  }
  func.func @transform_1(%arg0: i32, %arg1: i32) -> (i32, i32) {
    %c0_i32 = arith.constant 0 : i32
    %c0_i32_0 = arith.constant 0 : i32
    return %arg1, %c0_i32 : i32, i32
  }
  func.func @transform_2(%arg0: i32, %arg1: i32) -> (i32, i32) {
    %c0_i32 = arith.constant 0 : i32
    %c0_i32_0 = arith.constant 0 : i32
    %c0_i32_1 = arith.constant 0 : i32
    return %c0_i32, %c0_i32_0 : i32, i32
  }
  func.func @transform_3(%arg0: i32, %arg1: i32) -> (i32, i32) {
    %c0_i32 = arith.constant 0 : i32
    %c0_i32_0 = arith.constant 0 : i32
    return %arg0, %c0_i32 : i32, i32
  }
}

</mosaic_0001>

<llo_original>
// kernel: tpu_custom_call.1
$region0: #{tpu_custom_call.1}
  #allocation0 [shape = 'u32[]', space=smem, size = 0x4, offset = 0x4, fixed_abs, tag = 'smem constant byte address 0x4 - core index']
  #allocation1 [shape = 'u32[144,128]{1,0:T(1,128)}', space=vmem, size = 0x12000, scoped, tag = 'internal scratch']
  #allocation2 [shape = 'f32[8,128]{1,0:T(8,128)}', space=vmem, size = 0x1000, scoped, tag = 'scratch operand']
  %s0 = inlined_call_operand.hbm [shape: f32[8,128], index: 0, kind: input, shape index: {}]
  %s1 = inlined_call_operand.hbm [shape: f32[128,128], index: 1, kind: input, shape index: {}]
  %s2 = inlined_call_operand.hbm [shape: f32[8,128], index: 2, kind: input, shape index: {}]
  %s3 = inlined_call_operand.hbm [shape: f32[8,128], index: 3, kind: output, shape index: {}]
  %s4 = sld [smem:[#allocation0]]
  $region42: #{tpu_custom_call.1} parent=0
    _
  %s6 = ssub.s32 1, %s4
  %s7 = scalar_select 0, %s6, %s4
  $region1: #{tpu_custom_call.1} parent=0
    #allocation3 [shape = 'u8[4096]{0}', space=vmem, size = 0x1000, scoped, tag = 'input window, operand 0, single buffered']
    #allocation4 [shape = 's32[1]{0}', space=sflag, size = 0x4, scoped, tag = 'scoped memory for tpu_custom_call.1']
    #allocation5 [shape = 's32[1]{0}', space=sflag, size = 0x4, scoped, tag = 'scoped memory for tpu_custom_call.1']
    #allocation6 [shape = 'u8[65536]{0}', space=vmem, size = 0x10000, scoped, tag = 'input window, operand 1, single buffered']
    #allocation7 [shape = 's32[1]{0}', space=sflag, size = 0x4, scoped, tag = 'scoped memory for tpu_custom_call.1']
    #allocation8 [shape = 'u8[4096]{0}', space=vmem, size = 0x1000, scoped, tag = 'input window, operand 2, single buffered']
    #allocation9 [shape = 'u8[4096]{0}', space=vmem, size = 0x1000, scoped, tag = 'output window, operand 0, single buffered']
    %8 = vsyncpa [#allocation4], 0
    %9 = vsyncpa [#allocation7], 0
    %10 = vsyncpa [#allocation5], 0
    // Predicated region
    $region2: #{tpu_custom_call.1} parent=1 // pred_check
      _
    $region3: #{tpu_custom_call.1} parent=1 // pred_check_branch
      %12 = sbr.rel (0) target = $region5
    $region4: #{tpu_custom_call.1} parent=1 // pred_region
      %s14 = ssub.s32 128, 128
      %15 = vsyncadd [#allocation4], %s14
      %s17 = sshll.u32 [#allocation3], 4
      %s18 = int_to_ptr.vmem [resolvable:$true] %s17
      %20 = dma.hbm_to_vmem [thread:$0]  %s0, 128, %s18, [#allocation4]
    $region5: #{tpu_custom_call.1} parent=1 // pred_fallthru
      _
    // Predicated region
    $region6: #{tpu_custom_call.1} parent=1 // pred_check
      _
    $region7: #{tpu_custom_call.1} parent=1 // pred_check_branch
      %22 = sbr.rel (0) target = $region9
    $region8: #{tpu_custom_call.1} parent=1 // pred_region
      %s24 = ssub.s32 2048, 2048
      %25 = vsyncadd [#allocation7], %s24
      %s26 = sshll.u32 [#allocation6], 4
      %s27 = int_to_ptr.vmem [resolvable:$true] %s26
      %32 = dma.hbm_to_vmem [thread:$0]  %s1, 2048, %s27, [#allocation7], 128, 128, 8
    $region9: #{tpu_custom_call.1} parent=1 // pred_fallthru
      _
    // Predicated region
    $region10: #{tpu_custom_call.1} parent=1 // pred_check
      _
    $region11: #{tpu_custom_call.1} parent=1 // pred_check_branch
      %34 = sbr.rel (0) target = $region13
    $region12: #{tpu_custom_call.1} parent=1 // pred_region
      %s36 = ssub.s32 128, 128
      %37 = vsyncadd [#allocation7], %s36
      %s39 = sshll.u32 [#allocation8], 4
      %s40 = int_to_ptr.vmem [resolvable:$true] %s39
      %42 = dma.hbm_to_vmem [thread:$0]  %s2, 128, %s40, [#allocation7]
    $region13: #{tpu_custom_call.1} parent=1 // pred_fallthru
      _
    // Predicated region
    $region14: #{tpu_custom_call.1} parent=1 // pred_check
      _
    $region15: #{tpu_custom_call.1} parent=1 // pred_check_branch
      %44 = sbr.rel (0) target = $region17
    $region16: #{tpu_custom_call.1} parent=1 // pred_region
      %45 = dma.done [#allocation4], 128
    $region17: #{tpu_custom_call.1} parent=1 // pred_fallthru
      _
    // Predicated region
    $region18: #{tpu_custom_call.1} parent=1 // pred_check
      _
    $region19: #{tpu_custom_call.1} parent=1 // pred_check_branch
      %47 = sbr.rel (0) target = $region21
    $region20: #{tpu_custom_call.1} parent=1 // pred_region
      %48 = dma.done [#allocation7], 2048
    $region21: #{tpu_custom_call.1} parent=1 // pred_fallthru
      _
    // Predicated region
    $region22: #{tpu_custom_call.1} parent=1 // pred_check
      _
    $region23: #{tpu_custom_call.1} parent=1 // pred_check_branch
      %50 = sbr.rel (0) target = $region25
    $region24: #{tpu_custom_call.1} parent=1 // pred_region
      %51 = dma.done [#allocation7], 128
    $region25: #{tpu_custom_call.1} parent=1 // pred_fallthru
      _
    %p52 = scmp.eq.s32.totalorder 0, 0
    // Predicated region
    $region26: #{tpu_custom_call.1} parent=1 // pred_check
      %p53 = pneg %p52
    $region27: #{tpu_custom_call.1} parent=1 // pred_check_branch
      %55 = sbr.rel (%p53) target = $region29
    $region28: #{tpu_custom_call.1} parent=1 // pred_region
      %56 = vst [vmem:[#allocation2] sm:$0xff] 0.0
    $region29: #{tpu_custom_call.1} parent=1 // pred_fallthru
      _
    %v57 = vld [vmem:[#allocation3] sm:$0xff]
    %v58 = vld [vmem:[#allocation2] sm:$0xff]
    %v59 = vld [vmem:[#allocation6] sm:$0xff]
    %v60 = vld [vmem:[#allocation6 + $0x8] sm:$0xff]
    %v61 = vld [vmem:[#allocation6 + $0x10] sm:$0xff]
    %v62 = vld [vmem:[#allocation6 + $0x18] sm:$0xff]
    %v63 = vld [vmem:[#allocation6 + $0x20] sm:$0xff]
    %v64 = vld [vmem:[#allocation6 + $0x28] sm:$0xff]
    %v65 = vld [vmem:[#allocation6 + $0x30] sm:$0xff]
    %v66 = vld [vmem:[#allocation6 + $0x38] sm:$0xff]
    %v67 = vld [vmem:[#allocation6 + $0x40] sm:$0xff]
    %v68 = vld [vmem:[#allocation6 + $0x48] sm:$0xff]
    %v69 = vld [vmem:[#allocation6 + $0x50] sm:$0xff]
    %v70 = vld [vmem:[#allocation6 + $0x58] sm:$0xff]
    %v71 = vld [vmem:[#allocation6 + $0x60] sm:$0xff]
    %v72 = vld [vmem:[#allocation6 + $0x68] sm:$0xff]
    %v73 = vld [vmem:[#allocation6 + $0x70] sm:$0xff]
    %v74 = vld [vmem:[#allocation6 + $0x78] sm:$0xff]
    %75 = vmatprep.subr.mxu0 0.0
    %76 = vmatpush1.msra.mxu0 %v74
    %77 = vmatprep.subr.mxu0 0.0
    %78 = vmatpush1.msra.mxu0 %v73
    %79 = vmatprep.subr.mxu0 0.0
    %80 = vmatpush1.msra.mxu0 %v72
    %81 = vmatprep.subr.mxu0 0.0
    %82 = vmatpush1.msra.mxu0 %v71
    %83 = vmatprep.subr.mxu0 0.0
    %84 = vmatpush1.msra.mxu0 %v70
    %85 = vmatprep.subr.mxu0 0.0
    %86 = vmatpush1.msra.mxu0 %v69
    %87 = vmatprep.subr.mxu0 0.0
    %88 = vmatpush1.msra.mxu0 %v68
    %89 = vmatprep.subr.mxu0 0.0
    %90 = vmatpush1.msra.mxu0 %v67
    %91 = vmatprep.subr.mxu0 0.0
    %92 = vmatpush1.msra.mxu0 %v66
    %93 = vmatprep.subr.mxu0 0.0
    %94 = vmatpush1.msra.mxu0 %v65
    %95 = vmatprep.subr.mxu0 0.0
    %96 = vmatpush1.msra.mxu0 %v64
    %97 = vmatprep.subr.mxu0 0.0
    %98 = vmatpush1.msra.mxu0 %v63
    %99 = vmatprep.subr.mxu0 0.0
    %100 = vmatpush1.msra.mxu0 %v62
    %101 = vmatprep.subr.mxu0 0.0
    %102 = vmatpush1.msra.mxu0 %v61
    %103 = vmatprep.subr.mxu0 0.0
    %104 = vmatpush1.msra.mxu0 %v60
    %105 = vmatprep.subr.mxu0 0.0
    %106 = vmatpush1.msra.mxu0 %v59
    %107 = vmatprep.subr.mxu0 0.0
    %108 = vmatpush2.msra.mxu0 0.0
    %109 = vmatprep.subr.mxu0 0.0
    %110 = vmatpush2.msra.mxu0 0.0
    %111 = vmatprep.subr.mxu0 0.0
    %112 = vmatpush2.msra.mxu0 0.0
    %113 = vmatprep.subr.mxu0 0.0
    %114 = vmatpush2.msra.mxu0 0.0
    %115 = vmatprep.subr.mxu0 0.0
    %116 = vmatpush2.msra.mxu0 0.0
    %117 = vmatprep.subr.mxu0 0.0
    %118 = vmatpush2.msra.mxu0 0.0
    %119 = vmatprep.subr.mxu0 0.0
    %120 = vmatpush2.msra.mxu0 0.0
    %121 = vmatprep.subr.mxu0 0.0
    %122 = vmatpush2.msra.mxu0 0.0
    %123 = vmatprep.subr.mxu0 0.0
    %124 = vmatpush2.msra.mxu0 0.0
    %125 = vmatprep.subr.mxu0 0.0
    %126 = vmatpush2.msra.mxu0 0.0
    %127 = vmatprep.subr.mxu0 0.0
    %128 = vmatpush2.msra.mxu0 0.0
    %129 = vmatprep.subr.mxu0 0.0
    %130 = vmatpush2.msra.mxu0 0.0
    %131 = vmatprep.subr.mxu0 0.0
    %132 = vmatpush2.msra.mxu0 0.0
    %133 = vmatprep.subr.mxu0 0.0
    %134 = vmatpush2.msra.mxu0 0.0
    %135 = vmatprep.subr.mxu0 0.0
    %136 = vmatpush2.msra.mxu0 0.0
    %137 = vmatprep.subr.mxu0 0.0
    %138 = vmatpush2.msra.mxu0 0.0
    %139 = vmatprep.mubr.f32.mxu0 0.0
    %140 = vmatmul.mubr.f32.gmra.mxu0 %v57
    %v141 = vpop.f32.mrf.mxu0
    %v142 = vadd.f32 0.0, %v141
    %v143 = vpop.f32.mrf.mxu0
    %144 = vdwg.mxu0
    %v145 = vadd.f32 %v58, %v142
    %146 = vst [vmem:[#allocation2] sm:$0xff] %v145
    // Predicated region
    $region30: #{tpu_custom_call.1} parent=1 // pred_check
      %p147 = pneg %p52
    $region31: #{tpu_custom_call.1} parent=1 // pred_check_branch
      %149 = sbr.rel (%p147) target = $region33
    $region32: #{tpu_custom_call.1} parent=1 // pred_region
      %v150 = vld [vmem:[#allocation8] sm:$0x1]
      %v151 = vld [vmem:[#allocation8 + $0x1] sm:$0x1]
      %v152 = vld [vmem:[#allocation8 + $0x2] sm:$0x1]
      %v153 = vld [vmem:[#allocation2] sm:$0xff]
      %v154 = vlaneseq
      %v155 = vshrl.u32 %v154, 7
      %v156 = vsub.s32 0, %v155
      %v157 = vrot.slane %v150, %v156
      %v158 = vadd.f32 %v153, %v157
      %159 = vadd.xlane.f32.xlu0 %v158
      %v160 = vpop.xlane.xlu0 %159
      %v161 = vmul.f32 %v160, 0.015625
      %v162 = vsub.f32 %v158, %v161
      %v163 = vlaneseq
      %v164 = vand.u32 %v163, 127
      %vm165 = vcmp.lt.s32.totalorder %v164, 64
      %v166 = vsel %vm165, %v162, 0.0
      %v167 = vmul.f32 %v166, %v166
      %168 = vadd.xlane.f32.xlu0 %v167
      %v169 = vpop.xlane.xlu0 %168
      %v170 = vmul.f32 %v169, 0.015625
      %v171 = vadd.f32 %v170, 1e-05
      %v172 = vrsqrt.pop %v171
      %v173 = vmul.f32 %v166, %v172
      %v174 = vlaneseq
      %v175 = vshrl.u32 %v174, 7
      %v176 = vsub.s32 0, %v175
      %v177 = vrot.slane %v151, %v176
      %v178 = vmul.f32 %v173, %v177
      %v179 = vlaneseq
      %v180 = vshrl.u32 %v179, 7
      %v181 = vsub.s32 0, %v180
      %v182 = vrot.slane %v152, %v181
      %v183 = vadd.f32 %v178, %v182
      %184 = vst [vmem:[#allocation9] sm:$0xff] %v183
    $region33: #{tpu_custom_call.1} parent=1 // pred_fallthru
      _
    // Predicated region
    $region34: #{tpu_custom_call.1} parent=1 // pred_check
      _
    $region35: #{tpu_custom_call.1} parent=1 // pred_check_branch
      %186 = sbr.rel (0) target = $region37
    $region36: #{tpu_custom_call.1} parent=1 // pred_region
      %s188 = ssub.s32 128, 128
      %189 = vsyncadd [#allocation5], %s188
      %s191 = sshll.u32 [#allocation9], 4
      %s192 = int_to_ptr.vmem [resolvable:$true] %s191
      %194 = dma.vmem_to_hbm [thread:$0]  %s192, 128, %s3, [#allocation5]
    $region37: #{tpu_custom_call.1} parent=1 // pred_fallthru
      _
    // Predicated region
    $region38: #{tpu_custom_call.1} parent=1 // pred_check
      _
    $region39: #{tpu_custom_call.1} parent=1 // pred_check_branch
      %196 = sbr.rel (0) target = $region41
    $region40: #{tpu_custom_call.1} parent=1 // pred_region
      %197 = dma.done [#allocation5], 128
    $region41: #{tpu_custom_call.1} parent=1 // pred_fallthru
      _
    %198 = vsyncpa [#allocation4], 1
    %199 = vsyncpa [#allocation7], 1
    %200 = vsyncpa [#allocation5], 1

</llo_original>
